<compile_context>
chip_gen: v5e
topology: v5e:2x2
jax: 0.10.0
libtpu: 0.0.40
codegen_flags: <defaults>
</compile_context>

<pallas_src>
import functools

import jax
import jax.numpy as jnp
from jax.experimental import pallas as pl
from jax.experimental.pallas import tpu as pltpu


def _attention_topn_kernel(x_ref, wenc_ref, benc_ref, wa_ref, ba_ref,
                           wf_ref, bf_ref, e_ref, s_ref, wout_ref, bout_ref,
                           out_ref):
    """Fully fused forward pass; one MXU pass per stage, no in-kernel lane slicing."""
    x = x_ref[...]

    # Stage 1: all N MLPEncoders as a single block-diagonal matmul (+bias, ReLU).
    h_cat = jnp.maximum(
        jnp.dot(x, wenc_ref[...], preferred_element_type=jnp.float32)
        + benc_ref[...], 0.0)                                            # [bb, N*H]

    # Stage 2: attention_mlp consumes the concatenated hidden directly.
    att_h = jnp.maximum(
        jnp.dot(h_cat, wa_ref[...], preferred_element_type=jnp.float32)
        + ba_ref[...], 0.0)                                              # [bb, H]

    # Stage 3: fc_att (raw per-modality scores; the module applies no softmax).
    att = (jnp.dot(att_h, wf_ref[...], preferred_element_type=jnp.float32)
           + bf_ref[...])                                                # [bb, N]

    # Stage 4: expand att over lanes on the MXU (0/1 expansion matrix), weight
    # the hiddens elementwise, and reduce the N blocks with a 0/1 summation
    # matrix on the MXU — equivalent to sum_i h_i * att[:, i:i+1] exactly
    # (the extra terms in the matmuls multiply exact zeros).
    att_rep = jnp.dot(att, e_ref[...], preferred_element_type=jnp.float32)   # [bb, N*H]
    fused = jnp.dot(h_cat * att_rep, s_ref[...],
                    preferred_element_type=jnp.float32)                      # [bb, H]

    # Stage 5: single lane-dense output = [fused | fc_out_1 | fc_out_2]
    # via W_out = [I_H | W1 | W2], b_out = [0 | b1 | b2].
    out_ref[...] = (jnp.dot(fused, wout_ref[...], preferred_element_type=jnp.float32)
                    + bout_ref[...])


def attention_topn_forward(feats, params, *, block_b=512):
    """Packs params wrapper-side and calls the fused Pallas kernel (batch-tiled grid)."""
    n = len(feats)
    B = feats[0].shape[0]
    D = [int(f.shape[1]) for f in feats]
    Dtot = sum(D)
    H = params["attention_mlp"][0].shape[1]
    NH = n * H
    O1 = params["fc_out_1"][0].shape[1]
    O2 = params["fc_out_2"][0].shape[1]
    Oall = H + O1 + O2

    f32 = jnp.float32

    # ---- wrapper-side packing (pure XLA, tiny) ----
    x = jnp.concatenate([f.astype(f32) for f in feats], axis=1)            # [B, Dtot]

    # Block-diagonal encoder weight + concatenated bias.
    rows = []
    for i, (w, _) in enumerate(params["enc"]):
        left = jnp.zeros((D[i], i * H), f32)
        right = jnp.zeros((D[i], (n - 1 - i) * H), f32)
        rows.append(jnp.concatenate([left, w.astype(f32), right], axis=1))
    w_enc = jnp.concatenate(rows, axis=0)                                  # [Dtot, NH]
    b_enc = jnp.concatenate([b.astype(f32) for _, b in params["enc"]], axis=1)  # [1, NH]

    wa, ba = params["attention_mlp"]
    wf, bf = params["fc_att"]
    w1, b1 = params["fc_out_1"]
    w2, b2 = params["fc_out_2"]

    # att lane-expansion / block-summation constants (0/1 matrices, MXU-friendly).
    e_mat = jnp.kron(jnp.eye(n, dtype=f32), jnp.ones((1, H), f32))         # [N, NH]
    s_mat = jnp.kron(jnp.ones((n, 1), f32), jnp.eye(H, dtype=f32))         # [NH, H]

    # Fused output head: [features | emos | vals] in one lane-dense matmul.
    w_out = jnp.concatenate([jnp.eye(H, dtype=f32), w1.astype(f32), w2.astype(f32)],
                            axis=1)                                        # [H, Oall]
    b_out = jnp.concatenate([jnp.zeros((1, H), f32), b1.astype(f32), b2.astype(f32)],
                            axis=1)                                        # [1, Oall]

    # ---- batch tiling ----
    if B <= block_b:
        bb, Bp, xp = B, B, x
    else:
        bb = block_b                       # multiple of 8
        Bp = ((B + bb - 1) // bb) * bb
        xp = jnp.pad(x, ((0, Bp - B), (0, 0)))
    nb = Bp // bb

    const_specs = [
        pl.BlockSpec(w_enc.shape, lambda i: (0, 0)),
        pl.BlockSpec(b_enc.shape, lambda i: (0, 0)),
        pl.BlockSpec(wa.shape, lambda i: (0, 0)),
        pl.BlockSpec(ba.shape, lambda i: (0, 0)),
        pl.BlockSpec(wf.shape, lambda i: (0, 0)),
        pl.BlockSpec(bf.shape, lambda i: (0, 0)),
        pl.BlockSpec(e_mat.shape, lambda i: (0, 0)),
        pl.BlockSpec(s_mat.shape, lambda i: (0, 0)),
        pl.BlockSpec(w_out.shape, lambda i: (0, 0)),
        pl.BlockSpec(b_out.shape, lambda i: (0, 0)),
    ]
    in_specs = [pl.BlockSpec((bb, Dtot), lambda i: (i, 0))] + const_specs
    out_spec = pl.BlockSpec((bb, Oall), lambda i: (i, 0))

    # Advisory cost estimate so XLA can overlap this small custom call.
    flops = 2 * Bp * (Dtot * NH + NH * H + H * n + n * NH + NH * H + H * Oall)
    weight_bytes = 4 * (w_enc.size + b_enc.size + wa.size + ba.size + wf.size
                        + bf.size + e_mat.size + s_mat.size + w_out.size + b_out.size)
    bytes_accessed = 4 * (Bp * Dtot + Bp * Oall) + int(weight_bytes)
    cost = pl.CostEstimate(flops=int(flops), transcendentals=0,
                           bytes_accessed=int(bytes_accessed))

    out_all = pl.pallas_call(
        _attention_topn_kernel,
        out_shape=jax.ShapeDtypeStruct((Bp, Oall), f32),
        grid=(nb,),
        in_specs=in_specs,
        out_specs=out_spec,
        compiler_params=pltpu.CompilerParams(
            dimension_semantics=("parallel",)),
        cost_estimate=cost,
    )(xp, w_enc, b_enc, wa, ba, wf, bf, e_mat, s_mat, w_out, b_out)

    out_all = out_all[:B]
    features = out_all[:, :H]
    emos_out = out_all[:, H:H + O1]
    vals_out = out_all[:, H + O1:]
    interloss = jnp.zeros((), dtype=f32)
    return features, emos_out, vals_out, interloss


def _reference_forward(feats, params):
    """Pure-JAX reference mirroring the PyTorch forward (eval mode)."""
    hiddens = []
    for x, (w, b) in zip(feats, params["enc"]):
        hiddens.append(jnp.maximum(x @ w + b, 0.0))
    multi_hidden1 = jnp.concatenate(hiddens, axis=1)
    wa, ba = params["attention_mlp"]
    att = jnp.maximum(multi_hidden1 @ wa + ba, 0.0)
    wf, bf = params["fc_att"]
    att = att @ wf + bf                                   # [B, N]
    att = att[:, :, None]                                 # unsqueeze(2)
    multi_hidden2 = jnp.stack(hiddens, axis=2)            # [B, H, N]
    fused = jnp.matmul(multi_hidden2, att)[:, :, 0]       # [B, H]
    w1, b1 = params["fc_out_1"]
    w2, b2 = params["fc_out_2"]
    return fused, fused @ w1 + b1, fused @ w2 + b2


def _init_params(key, feat_dims, hidden_dim, output_dim1, output_dim2):
    """Deterministic synthetic parameter init (shapes match the nn.Module)."""
    def linear(k, din, dout):
        kw, kb = jax.random.split(k)
        w = jax.random.normal(kw, (din, dout), jnp.float32) * 0.05
        b = jax.random.normal(kb, (1, dout), jnp.float32) * 0.05
        return w, b

    n = len(feat_dims)
    keys = jax.random.split(key, n + 4)
    return {
        "enc": [linear(keys[i], feat_dims[i], hidden_dim) for i in range(n)],
        "attention_mlp": linear(keys[n], hidden_dim * n, hidden_dim),
        "fc_att": linear(keys[n + 1], hidden_dim, n),
        "fc_out_1": linear(keys[n + 2], hidden_dim, output_dim1),
        "fc_out_2": linear(keys[n + 3], hidden_dim, output_dim2),
    }


if __name__ == "__main__":
    # Small, module-consistent shapes: 3 modalities, batch=8, hidden=32.
    feat_dims = [20, 24, 28]      # args.audio_dim
    hidden_dim = 32               # args.hidden_dim
    output_dim1 = 6               # args.output_dim1 (emotion classes)
    output_dim2 = 1               # args.output_dim2 (valence)
    batch = 8

    root = jax.random.PRNGKey(0)
    k_params, k_data = jax.random.split(root)
    params = _init_params(k_params, feat_dims, hidden_dim, output_dim1, output_dim2)

    data_keys = jax.random.split(k_data, len(feat_dims))
    feats = [jax.random.normal(data_keys[i], (batch, feat_dims[i]), jnp.float32)
             for i in range(len(feat_dims))]

    features, emos_out, vals_out, interloss = attention_topn_forward(feats, params)
    jax.block_until_ready((features, emos_out, vals_out, interloss))

    # Correctness check against a pure-JAX reference of the PyTorch forward.
    ref_feat, ref_emos, ref_vals = _reference_forward(feats, params)
    assert features.shape == (batch, hidden_dim)
    assert emos_out.shape == (batch, output_dim1)
    assert vals_out.shape == (batch, output_dim2)
    assert jnp.allclose(features, ref_feat, atol=1e-4, rtol=1e-4)
    assert jnp.allclose(emos_out, ref_emos, atol=1e-4, rtol=1e-4)
    assert jnp.allclose(vals_out, ref_vals, atol=1e-4, rtol=1e-4)
    assert float(interloss) == 0.0

    print("KERNEL_OK")
</pallas_src>

<mosaic_0001>
module attributes {stable_mosaic.version = 11 : i64} {
  func.func @_attention_topn_kernel(%arg0: i32, %arg1: memref<8x72xf32, #tpu.memory_space<vmem>>, %arg2: memref<72x96xf32, #tpu.memory_space<vmem>>, %arg3: memref<1x96xf32, #tpu.memory_space<vmem>>, %arg4: memref<96x32xf32, #tpu.memory_space<vmem>>, %arg5: memref<1x32xf32, #tpu.memory_space<vmem>>, %arg6: memref<32x3xf32, #tpu.memory_space<vmem>>, %arg7: memref<1x3xf32, #tpu.memory_space<vmem>>, %arg8: memref<3x96xf32, #tpu.memory_space<vmem>>, %arg9: memref<96x32xf32, #tpu.memory_space<vmem>>, %arg10: memref<32x39xf32, #tpu.memory_space<vmem>>, %arg11: memref<1x39xf32, #tpu.memory_space<vmem>>, %arg12: memref<8x39xf32, #tpu.memory_space<vmem>>) attributes {dimension_semantics = [#tpu.dimension_semantics<parallel>], iteration_bounds = array<i64: 1>, scalar_prefetch = 0 : i64, scratch_operands = 0 : i64, tpu.core_type = #tpu.core_type<tc>, window_params = [{transform_indices = @transform_0, window_bounds = array<i64: 8, 72>}, {pipeline_mode = #tpu.pipeline_mode<synchronous>, transform_indices = @transform_1, window_bounds = array<i64: 72, 96>}, {pipeline_mode = #tpu.pipeline_mode<synchronous>, transform_indices = @transform_2, window_bounds = array<i64: 1, 96>}, {pipeline_mode = #tpu.pipeline_mode<synchronous>, transform_indices = @transform_3, window_bounds = array<i64: 96, 32>}, {pipeline_mode = #tpu.pipeline_mode<synchronous>, transform_indices = @transform_4, window_bounds = array<i64: 1, 32>}, {pipeline_mode = #tpu.pipeline_mode<synchronous>, transform_indices = @transform_5, window_bounds = array<i64: 32, 3>}, {pipeline_mode = #tpu.pipeline_mode<synchronous>, transform_indices = @transform_6, window_bounds = array<i64: 1, 3>}, {pipeline_mode = #tpu.pipeline_mode<synchronous>, transform_indices = @transform_7, window_bounds = array<i64: 3, 96>}, {pipeline_mode = #tpu.pipeline_mode<synchronous>, transform_indices = @transform_8, window_bounds = array<i64: 96, 32>}, {pipeline_mode = #tpu.pipeline_mode<synchronous>, transform_indices = @transform_9, window_bounds = array<i64: 32, 39>}, {pipeline_mode = #tpu.pipeline_mode<synchronous>, transform_indices = @transform_10, window_bounds = array<i64: 1, 39>}, {transform_indices = @transform_11, window_bounds = array<i64: 8, 39>}]} {
    %c0 = arith.constant 0 : index
    %c0_0 = arith.constant 0 : index
    %0 = vector.load %arg1[%c0, %c0_0] : memref<8x72xf32, #tpu.memory_space<vmem>>, vector<8x72xf32>
    %c0_1 = arith.constant 0 : index
    %c0_2 = arith.constant 0 : index
    %1 = vector.load %arg2[%c0_1, %c0_2] : memref<72x96xf32, #tpu.memory_space<vmem>>, vector<72x96xf32>
    %cst = arith.constant dense<0.000000e+00> : vector<8x96xf32>
    %2 = tpu.matmul %0, %1, %cst {dimension_numbers = #tpu.dot_dimension_numbers<[1], [0], [0], [1], [0, 0, 1, 1], [], []>} : vector<8x72xf32>, vector<72x96xf32>, vector<8x96xf32> -> vector<8x96xf32>
    %c0_3 = arith.constant 0 : index
    %c0_4 = arith.constant 0 : index
    %3 = vector.load %arg3[%c0_3, %c0_4] : memref<1x96xf32, #tpu.memory_space<vmem>>, vector<1x96xf32>
    %4 = vector.broadcast %3 : vector<1x96xf32> to vector<8x96xf32>
    %5 = arith.addf %2, %4 : vector<8x96xf32>
    %cst_5 = arith.constant 0.000000e+00 : f32
    %6 = vector.broadcast %cst_5 : f32 to vector<8x96xf32>
    %7 = arith.maximumf %5, %6 : vector<8x96xf32>
    %c0_6 = arith.constant 0 : index
    %c0_7 = arith.constant 0 : index
    %8 = vector.load %arg4[%c0_6, %c0_7] : memref<96x32xf32, #tpu.memory_space<vmem>>, vector<96x32xf32>
    %cst_8 = arith.constant dense<0.000000e+00> : vector<8x32xf32>
    %9 = tpu.matmul %7, %8, %cst_8 {dimension_numbers = #tpu.dot_dimension_numbers<[1], [0], [0], [1], [0, 0, 1, 1], [], []>} : vector<8x96xf32>, vector<96x32xf32>, vector<8x32xf32> -> vector<8x32xf32>
    %c0_9 = arith.constant 0 : index
    %c0_10 = arith.constant 0 : index
    %10 = vector.load %arg5[%c0_9, %c0_10] : memref<1x32xf32, #tpu.memory_space<vmem>>, vector<1x32xf32>
    %11 = vector.broadcast %10 : vector<1x32xf32> to vector<8x32xf32>
    %12 = arith.addf %9, %11 : vector<8x32xf32>
    %cst_11 = arith.constant 0.000000e+00 : f32
    %13 = vector.broadcast %cst_11 : f32 to vector<8x32xf32>
    %14 = arith.maximumf %12, %13 : vector<8x32xf32>
    %c0_12 = arith.constant 0 : index
    %c0_13 = arith.constant 0 : index
    %15 = vector.load %arg6[%c0_12, %c0_13] : memref<32x3xf32, #tpu.memory_space<vmem>>, vector<32x3xf32>
    %cst_14 = arith.constant dense<0.000000e+00> : vector<8x3xf32>
    %16 = tpu.matmul %14, %15, %cst_14 {dimension_numbers = #tpu.dot_dimension_numbers<[1], [0], [0], [1], [0, 0, 1, 1], [], []>} : vector<8x32xf32>, vector<32x3xf32>, vector<8x3xf32> -> vector<8x3xf32>
    %c0_15 = arith.constant 0 : index
    %c0_16 = arith.constant 0 : index
    %17 = vector.load %arg7[%c0_15, %c0_16] : memref<1x3xf32, #tpu.memory_space<vmem>>, vector<1x3xf32>
    %18 = vector.broadcast %17 : vector<1x3xf32> to vector<8x3xf32>
    %19 = arith.addf %16, %18 : vector<8x3xf32>
    %c0_17 = arith.constant 0 : index
    %c0_18 = arith.constant 0 : index
    %20 = vector.load %arg8[%c0_17, %c0_18] : memref<3x96xf32, #tpu.memory_space<vmem>>, vector<3x96xf32>
    %cst_19 = arith.constant dense<0.000000e+00> : vector<8x96xf32>
    %21 = tpu.matmul %19, %20, %cst_19 {dimension_numbers = #tpu.dot_dimension_numbers<[1], [0], [0], [1], [0, 0, 1, 1], [], []>} : vector<8x3xf32>, vector<3x96xf32>, vector<8x96xf32> -> vector<8x96xf32>
    %22 = arith.mulf %7, %21 : vector<8x96xf32>
    %c0_20 = arith.constant 0 : index
    %c0_21 = arith.constant 0 : index
    %23 = vector.load %arg9[%c0_20, %c0_21] : memref<96x32xf32, #tpu.memory_space<vmem>>, vector<96x32xf32>
    %cst_22 = arith.constant dense<0.000000e+00> : vector<8x32xf32>
    %24 = tpu.matmul %22, %23, %cst_22 {dimension_numbers = #tpu.dot_dimension_numbers<[1], [0], [0], [1], [0, 0, 1, 1], [], []>} : vector<8x96xf32>, vector<96x32xf32>, vector<8x32xf32> -> vector<8x32xf32>
    %c0_23 = arith.constant 0 : index
    %c0_24 = arith.constant 0 : index
    %25 = vector.load %arg10[%c0_23, %c0_24] : memref<32x39xf32, #tpu.memory_space<vmem>>, vector<32x39xf32>
    %cst_25 = arith.constant dense<0.000000e+00> : vector<8x39xf32>
    %26 = tpu.matmul %24, %25, %cst_25 {dimension_numbers = #tpu.dot_dimension_numbers<[1], [0], [0], [1], [0, 0, 1, 1], [], []>} : vector<8x32xf32>, vector<32x39xf32>, vector<8x39xf32> -> vector<8x39xf32>
    %c0_26 = arith.constant 0 : index
    %c0_27 = arith.constant 0 : index
    %27 = vector.load %arg11[%c0_26, %c0_27] : memref<1x39xf32, #tpu.memory_space<vmem>>, vector<1x39xf32>
    %28 = vector.broadcast %27 : vector<1x39xf32> to vector<8x39xf32>
    %29 = arith.addf %26, %28 : vector<8x39xf32>
    %c0_28 = arith.constant 0 : index
    %c0_29 = arith.constant 0 : index
    %30 = vector.load %arg12[%c0_28, %c0_29] : memref<8x39xf32, #tpu.memory_space<vmem>>, vector<8x39xf32>
    tpu.vector_store %arg12[%c0_28, %c0_29], %29 {strides = array<i32>} : memref<8x39xf32, #tpu.memory_space<vmem>>, vector<8x39xf32>,
    return
  }
  func.func @transform_0(%arg0: i32) -> (i32, i32) {
    %c0_i32 = arith.constant 0 : i32
    %c0_i32_0 = arith.constant 0 : i32
    return %arg0, %c0_i32 : i32, i32
  }
  func.func @transform_1(%arg0: i32) -> (i32, i32) {
    %c0_i32 = arith.constant 0 : i32
    %c0_i32_0 = arith.constant 0 : i32
    %c0_i32_1 = arith.constant 0 : i32
    return %c0_i32, %c0_i32_0 : i32, i32
  }
  func.func @transform_2(%arg0: i32) -> (i32, i32) {
    %c0_i32 = arith.constant 0 : i32
    %c0_i32_0 = arith.constant 0 : i32
    %c0_i32_1 = arith.constant 0 : i32
    return %c0_i32, %c0_i32_0 : i32, i32
  }
  func.func @transform_3(%arg0: i32) -> (i32, i32) {
    %c0_i32 = arith.constant 0 : i32
    %c0_i32_0 = arith.constant 0 : i32
    %c0_i32_1 = arith.constant 0 : i32
    return %c0_i32, %c0_i32_0 : i32, i32
  }
  func.func @transform_4(%arg0: i32) -> (i32, i32) {
    %c0_i32 = arith.constant 0 : i32
    %c0_i32_0 = arith.constant 0 : i32
    %c0_i32_1 = arith.constant 0 : i32
    return %c0_i32, %c0_i32_0 : i32, i32
  }
  func.func @transform_5(%arg0: i32) -> (i32, i32) {
    %c0_i32 = arith.constant 0 : i32
    %c0_i32_0 = arith.constant 0 : i32
    %c0_i32_1 = arith.constant 0 : i32
    return %c0_i32, %c0_i32_0 : i32, i32
  }
  func.func @transform_6(%arg0: i32) -> (i32, i32) {
    %c0_i32 = arith.constant 0 : i32
    %c0_i32_0 = arith.constant 0 : i32
    %c0_i32_1 = arith.constant 0 : i32
    return %c0_i32, %c0_i32_0 : i32, i32
  }
  func.func @transform_7(%arg0: i32) -> (i32, i32) {
    %c0_i32 = arith.constant 0 : i32
    %c0_i32_0 = arith.constant 0 : i32
    %c0_i32_1 = arith.constant 0 : i32
    return %c0_i32, %c0_i32_0 : i32, i32
  }
  func.func @transform_8(%arg0: i32) -> (i32, i32) {
    %c0_i32 = arith.constant 0 : i32
    %c0_i32_0 = arith.constant 0 : i32
    %c0_i32_1 = arith.constant 0 : i32
    return %c0_i32, %c0_i32_0 : i32, i32
  }
  func.func @transform_9(%arg0: i32) -> (i32, i32) {
    %c0_i32 = arith.constant 0 : i32
    %c0_i32_0 = arith.constant 0 : i32
    %c0_i32_1 = arith.constant 0 : i32
    return %c0_i32, %c0_i32_0 : i32, i32
  }
  func.func @transform_10(%arg0: i32) -> (i32, i32) {
    %c0_i32 = arith.constant 0 : i32
    %c0_i32_0 = arith.constant 0 : i32
    %c0_i32_1 = arith.constant 0 : i32
    return %c0_i32, %c0_i32_0 : i32, i32
  }
  func.func @transform_11(%arg0: i32) -> (i32, i32) {
    %c0_i32 = arith.constant 0 : i32
    %c0_i32_0 = arith.constant 0 : i32
    return %arg0, %c0_i32 : i32, i32
  }
}

</mosaic_0001>

<llo_original>
// kernel: tpu_custom_call.1
$region0: #{tpu_custom_call.1}
  #allocation0 [shape = 'u32[]', space=smem, size = 0x4, offset = 0x4, fixed_abs, tag = 'smem constant byte address 0x4 - core index']
  #allocation1 [shape = 'u32[72,128]{1,0:T(1,128)}', space=vmem, size = 0x9000, scoped, tag = 'internal scratch']
  %s0 = inlined_call_operand.vmem [shape: f32[8,72], index: 0, kind: input, shape index: {}]
  %s1 = inlined_call_operand.vmem [shape: f32[72,96], index: 1, kind: input, shape index: {}]
  %s2 = inlined_call_operand.vmem [shape: f32[1,96], index: 2, kind: input, shape index: {}]
  %s3 = inlined_call_operand.vmem [shape: f32[96,32], index: 3, kind: input, shape index: {}]
  %s4 = inlined_call_operand.vmem [shape: f32[1,32], index: 4, kind: input, shape index: {}]
  %s5 = inlined_call_operand.vmem [shape: f32[32,3], index: 5, kind: input, shape index: {}]
  %s6 = inlined_call_operand.vmem [shape: f32[1,3], index: 6, kind: input, shape index: {}]
  %s7 = inlined_call_operand.vmem [shape: f32[3,96], index: 7, kind: input, shape index: {}]
  %s8 = inlined_call_operand.vmem [shape: f32[96,32], index: 8, kind: input, shape index: {}]
  %s9 = inlined_call_operand.vmem [shape: f32[32,39], index: 9, kind: input, shape index: {}]
  %s10 = inlined_call_operand.vmem [shape: f32[1,39], index: 10, kind: input, shape index: {}]
  %s11 = inlined_call_operand.hbm [shape: f32[8,39], index: 11, kind: output, shape index: {}]
  %s12 = sld [smem:[#allocation0]]
  $region54: #{tpu_custom_call.1} parent=0
    _
  %s14 = ssub.s32 1, %s12
  %s15 = scalar_select 0, %s14, %s12
  $region1: #{tpu_custom_call.1} parent=0
    #allocation2 [shape = 'u8[4096]{0}', space=vmem, size = 0x1000, scoped, tag = 'output window, operand 0, single buffered']
    #allocation3 [shape = 's32[1]{0}', space=sflag, size = 0x4, scoped, tag = 'scoped memory for tpu_custom_call.1']
    %16 = vsyncpa [#allocation3], 0
    // Predicated region
    $region2: #{tpu_custom_call.1} parent=1 // pred_check
      _
    $region3: #{tpu_custom_call.1} parent=1 // pred_check_branch
      %18 = sbr.rel (0) target = $region5
    $region4: #{tpu_custom_call.1} parent=1 // pred_region
      _
    $region5: #{tpu_custom_call.1} parent=1 // pred_fallthru
      _
    // Predicated region
    $region6: #{tpu_custom_call.1} parent=1 // pred_check
      _
    $region7: #{tpu_custom_call.1} parent=1 // pred_check_branch
      %20 = sbr.rel (0) target = $region9
    $region8: #{tpu_custom_call.1} parent=1 // pred_region
      _
    $region9: #{tpu_custom_call.1} parent=1 // pred_fallthru
      _
    // Predicated region
    $region10: #{tpu_custom_call.1} parent=1 // pred_check
      _
    $region11: #{tpu_custom_call.1} parent=1 // pred_check_branch
      %22 = sbr.rel (0) target = $region13
    $region12: #{tpu_custom_call.1} parent=1 // pred_region
      _
    $region13: #{tpu_custom_call.1} parent=1 // pred_fallthru
      _
    // Predicated region
    $region14: #{tpu_custom_call.1} parent=1 // pred_check
      _
    $region15: #{tpu_custom_call.1} parent=1 // pred_check_branch
      %24 = sbr.rel (0) target = $region17
    $region16: #{tpu_custom_call.1} parent=1 // pred_region
      _
    $region17: #{tpu_custom_call.1} parent=1 // pred_fallthru
      _
    // Predicated region
    $region18: #{tpu_custom_call.1} parent=1 // pred_check
      _
    $region19: #{tpu_custom_call.1} parent=1 // pred_check_branch
      %26 = sbr.rel (0) target = $region21
    $region20: #{tpu_custom_call.1} parent=1 // pred_region
      _
    $region21: #{tpu_custom_call.1} parent=1 // pred_fallthru
      _
    // Predicated region
    $region22: #{tpu_custom_call.1} parent=1 // pred_check
      _
    $region23: #{tpu_custom_call.1} parent=1 // pred_check_branch
      %28 = sbr.rel (0) target = $region25
    $region24: #{tpu_custom_call.1} parent=1 // pred_region
      _
    $region25: #{tpu_custom_call.1} parent=1 // pred_fallthru
      _
    // Predicated region
    $region26: #{tpu_custom_call.1} parent=1 // pred_check
      _
    $region27: #{tpu_custom_call.1} parent=1 // pred_check_branch
      %30 = sbr.rel (0) target = $region29
    $region28: #{tpu_custom_call.1} parent=1 // pred_region
      _
    $region29: #{tpu_custom_call.1} parent=1 // pred_fallthru
      _
    // Predicated region
    $region30: #{tpu_custom_call.1} parent=1 // pred_check
      _
    $region31: #{tpu_custom_call.1} parent=1 // pred_check_branch
      %32 = sbr.rel (0) target = $region33
    $region32: #{tpu_custom_call.1} parent=1 // pred_region
      _
    $region33: #{tpu_custom_call.1} parent=1 // pred_fallthru
      _
    // Predicated region
    $region34: #{tpu_custom_call.1} parent=1 // pred_check
      _
    $region35: #{tpu_custom_call.1} parent=1 // pred_check_branch
      %34 = sbr.rel (0) target = $region37
    $region36: #{tpu_custom_call.1} parent=1 // pred_region
      _
    $region37: #{tpu_custom_call.1} parent=1 // pred_fallthru
      _
    // Predicated region
    $region38: #{tpu_custom_call.1} parent=1 // pred_check
      _
    $region39: #{tpu_custom_call.1} parent=1 // pred_check_branch
      %36 = sbr.rel (0) target = $region41
    $region40: #{tpu_custom_call.1} parent=1 // pred_region
      _
    $region41: #{tpu_custom_call.1} parent=1 // pred_fallthru
      _
    // Predicated region
    $region42: #{tpu_custom_call.1} parent=1 // pred_check
      _
    $region43: #{tpu_custom_call.1} parent=1 // pred_check_branch
      %38 = sbr.rel (0) target = $region45
    $region44: #{tpu_custom_call.1} parent=1 // pred_region
      _
    $region45: #{tpu_custom_call.1} parent=1 // pred_fallthru
      _
    %v39 = vld [vmem:[%s0] sm:$0xff]
    %v40 = vld [vmem:[%s1] sm:$0xff]
    %v41 = vld [vmem:[%s1 + $0x8] sm:$0xff]
    %v42 = vld [vmem:[%s1 + $0x10] sm:$0xff]
    %v43 = vld [vmem:[%s1 + $0x18] sm:$0xff]
    %v44 = vld [vmem:[%s1 + $0x20] sm:$0xff]
    %v45 = vld [vmem:[%s1 + $0x28] sm:$0xff]
    %v46 = vld [vmem:[%s1 + $0x30] sm:$0xff]
    %v47 = vld [vmem:[%s1 + $0x38] sm:$0xff]
    %v48 = vld [vmem:[%s1 + $0x40] sm:$0xff]
    %v49 = vld [vmem:[%s2] sm:$0x1]
    %v51 = vperm.slane %v49, 0
    %vm53 = vcmask 588800
    %v55 = vsel %vm53, %v39, 0
    %57 = vmatpush.msra.mxu0 0.0
    %58 = vmatpush.msra.mxu0 0.0
    %59 = vmatpush.msra.mxu0 0.0
    %60 = vmatpush.msra.mxu0 0.0
    %61 = vmatpush.msra.mxu0 0.0
    %62 = vmatpush.msra.mxu0 0.0
    %63 = vmatpush.msra.mxu0 0.0
    %64 = vmatpush.msra.mxu0 %v48
    %65 = vmatpush.msra.mxu0 %v47
    %66 = vmatpush.msra.mxu0 %v46
    %67 = vmatpush.msra.mxu0 %v45
    %68 = vmatpush.msra.mxu0 %v44
    %69 = vmatpush.msra.mxu0 %v43
    %70 = vmatpush.msra.mxu0 %v42
    %71 = vmatpush.msra.mxu0 %v41
    %72 = vmatpush.msra.mxu0 %v40
    %73 = vmatmul.f32.gmra.mxu0 %v55
    %v74 = vpop.f32.mrf.mxu0
    %v75 = vadd.f32 %v51, %v74
    %76 = vdwg.mxu0
    %v77 = vmax.f32 %v75, 0.0
    %v78 = vld [vmem:[%s3] sm:$0xff]
    %v79 = vld [vmem:[%s3 + $0x8] sm:$0xff]
    %v80 = vld [vmem:[%s3 + $0x10] sm:$0xff]
    %v81 = vld [vmem:[%s3 + $0x18] sm:$0xff]
    %v82 = vld [vmem:[%s3 + $0x20] sm:$0xff]
    %v83 = vld [vmem:[%s3 + $0x28] sm:$0xff]
    %v84 = vld [vmem:[%s3 + $0x30] sm:$0xff]
    %v85 = vld [vmem:[%s3 + $0x38] sm:$0xff]
    %v86 = vld [vmem:[%s3 + $0x40] sm:$0xff]
    %v87 = vld [vmem:[%s3 + $0x48] sm:$0xff]
    %v88 = vld [vmem:[%s3 + $0x50] sm:$0xff]
    %v89 = vld [vmem:[%s3 + $0x58] sm:$0xff]
    %v90 = vld [vmem:[%s4] sm:$0x1]
    %v92 = vperm.slane %v90, 0
    %vm94 = vcmask 785408
    %v96 = vsel %vm94, %v77, 0
    %98 = vmatpush.msra.mxu0 0.0
    %99 = vmatpush.msra.mxu0 0.0
    %100 = vmatpush.msra.mxu0 0.0
    %101 = vmatpush.msra.mxu0 0.0
    %102 = vmatpush.msra.mxu0 %v89
    %103 = vmatpush.msra.mxu0 %v88
    %104 = vmatpush.msra.mxu0 %v87
    %105 = vmatpush.msra.mxu0 %v86
    %106 = vmatpush.msra.mxu0 %v85
    %107 = vmatpush.msra.mxu0 %v84
    %108 = vmatpush.msra.mxu0 %v83
    %109 = vmatpush.msra.mxu0 %v82
    %110 = vmatpush.msra.mxu0 %v81
    %111 = vmatpush.msra.mxu0 %v80
    %112 = vmatpush.msra.mxu0 %v79
    %113 = vmatpush.msra.mxu0 %v78
    %114 = vmatmul.f32.gmra.mxu0 %v96
    %v115 = vpop.f32.mrf.mxu0
    %v116 = vadd.f32 %v92, %v115
    %117 = vdwg.mxu0
    %v118 = vmax.f32 %v116, 0.0
    %v119 = vld [vmem:[%s5] sm:$0xff]
    %v120 = vld [vmem:[%s5 + $0x8] sm:$0xff]
    %v121 = vld [vmem:[%s5 + $0x10] sm:$0xff]
    %v122 = vld [vmem:[%s5 + $0x18] sm:$0xff]
    %v123 = vld [vmem:[%s6] sm:$0x1]
    %v125 = vperm.slane %v123, 0
    %vm127 = vcmask 261120
    %v129 = vsel %vm127, %v118, 0
    %131 = vmatpush.msra.mxu0 0.0
    %132 = vmatpush.msra.mxu0 0.0
    %133 = vmatpush.msra.mxu0 0.0
    %134 = vmatpush.msra.mxu0 0.0
    %135 = vmatpush.msra.mxu0 0.0
    %136 = vmatpush.msra.mxu0 0.0
    %137 = vmatpush.msra.mxu0 0.0
    %138 = vmatpush.msra.mxu0 0.0
    %139 = vmatpush.msra.mxu0 0.0
    %140 = vmatpush.msra.mxu0 0.0
    %141 = vmatpush.msra.mxu0 0.0
    %142 = vmatpush.msra.mxu0 0.0
    %143 = vmatpush.msra.mxu0 %v122
    %144 = vmatpush.msra.mxu0 %v121
    %145 = vmatpush.msra.mxu0 %v120
    %146 = vmatpush.msra.mxu0 %v119
    %147 = vmatmul.f32.gmra.mxu0 %v129
    %v148 = vpop.f32.mrf.mxu0
    %v149 = vadd.f32 %v125, %v148
    %150 = vdwg.mxu0
    %v151 = vld [vmem:[%s7] sm:$0x7]
    %vm152 = vcmask 23552
    %v154 = vsel %vm152, %v149, 0
    %vm156 = vcmask 1042432
    %v158 = vsel %vm156, %v151, 0
    %160 = vmatpush.msra.mxu0 0.0
    %161 = vmatpush.msra.mxu0 0.0
    %162 = vmatpush.msra.mxu0 0.0
    %163 = vmatpush.msra.mxu0 0.0
    %164 = vmatpush.msra.mxu0 0.0
    %165 = vmatpush.msra.mxu0 0.0
    %166 = vmatpush.msra.mxu0 0.0
    %167 = vmatpush.msra.mxu0 0.0
    %168 = vmatpush.msra.mxu0 0.0
    %169 = vmatpush.msra.mxu0 0.0
    %170 = vmatpush.msra.mxu0 0.0
    %171 = vmatpush.msra.mxu0 0.0
    %172 = vmatpush.msra.mxu0 0.0
    %173 = vmatpush.msra.mxu0 0.0
    %174 = vmatpush.msra.mxu0 0.0
    %175 = vmatpush.msra.mxu0 %v158
    %176 = vmatmul.f32.gmra.mxu0 %v154
    %v177 = vpop.f32.mrf.mxu0
    %v178 = vadd.f32 0.0, %v177
    %179 = vdwg.mxu0
    %v180 = vmul.f32 %v77, %v178
    %v181 = vld [vmem:[%s8] sm:$0xff]
    %v182 = vld [vmem:[%s8 + $0x8] sm:$0xff]
    %v183 = vld [vmem:[%s8 + $0x10] sm:$0xff]
    %v184 = vld [vmem:[%s8 + $0x18] sm:$0xff]
    %v185 = vld [vmem:[%s8 + $0x20] sm:$0xff]
    %v186 = vld [vmem:[%s8 + $0x28] sm:$0xff]
    %v187 = vld [vmem:[%s8 + $0x30] sm:$0xff]
    %v188 = vld [vmem:[%s8 + $0x38] sm:$0xff]
    %v189 = vld [vmem:[%s8 + $0x40] sm:$0xff]
    %v190 = vld [vmem:[%s8 + $0x48] sm:$0xff]
    %v191 = vld [vmem:[%s8 + $0x50] sm:$0xff]
    %v192 = vld [vmem:[%s8 + $0x58] sm:$0xff]
    %v194 = vsel %vm94, %v180, 0
    %196 = vmatpush.msra.mxu0 0.0
    %197 = vmatpush.msra.mxu0 0.0
    %198 = vmatpush.msra.mxu0 0.0
    %199 = vmatpush.msra.mxu0 0.0
    %200 = vmatpush.msra.mxu0 %v192
    %201 = vmatpush.msra.mxu0 %v191
    %202 = vmatpush.msra.mxu0 %v190
    %203 = vmatpush.msra.mxu0 %v189
    %204 = vmatpush.msra.mxu0 %v188
    %205 = vmatpush.msra.mxu0 %v187
    %206 = vmatpush.msra.mxu0 %v186
    %207 = vmatpush.msra.mxu0 %v185
    %208 = vmatpush.msra.mxu0 %v184
    %209 = vmatpush.msra.mxu0 %v183
    %210 = vmatpush.msra.mxu0 %v182
    %211 = vmatpush.msra.mxu0 %v181
    %212 = vmatmul.f32.gmra.mxu0 %v194
    %v213 = vpop.f32.mrf.mxu0
    %v214 = vadd.f32 0.0, %v213
    %215 = vdwg.mxu0
    %v216 = vld [vmem:[%s9] sm:$0xff]
    %v217 = vld [vmem:[%s9 + $0x8] sm:$0xff]
    %v218 = vld [vmem:[%s9 + $0x10] sm:$0xff]
    %v219 = vld [vmem:[%s9 + $0x18] sm:$0xff]
    %v220 = vld [vmem:[%s10] sm:$0x1]
    %v222 = vperm.slane %v220, 0
    %v225 = vsel %vm127, %v214, 0
    %227 = vmatpush.msra.mxu0 0.0
    %228 = vmatpush.msra.mxu0 0.0
    %229 = vmatpush.msra.mxu0 0.0
    %230 = vmatpush.msra.mxu0 0.0
    %231 = vmatpush.msra.mxu0 0.0
    %232 = vmatpush.msra.mxu0 0.0
    %233 = vmatpush.msra.mxu0 0.0
    %234 = vmatpush.msra.mxu0 0.0
    %235 = vmatpush.msra.mxu0 0.0
    %236 = vmatpush.msra.mxu0 0.0
    %237 = vmatpush.msra.mxu0 0.0
    %238 = vmatpush.msra.mxu0 0.0
    %239 = vmatpush.msra.mxu0 %v219
    %240 = vmatpush.msra.mxu0 %v218
    %241 = vmatpush.msra.mxu0 %v217
    %242 = vmatpush.msra.mxu0 %v216
    %243 = vmatmul.f32.gmra.mxu0 %v225
    %v244 = vpop.f32.mrf.mxu0
    %v245 = vadd.f32 %v222, %v244
    %246 = vdwg.mxu0
    %vm247 = vcmask 318464
    %248 = vst.msk [vmem:[#allocation2] sm:$0xff] %vm247, %v245
    // Predicated region
    $region46: #{tpu_custom_call.1} parent=1 // pred_check
      _
    $region47: #{tpu_custom_call.1} parent=1 // pred_check_branch
      %250 = sbr.rel (0) target = $region49
    $region48: #{tpu_custom_call.1} parent=1 // pred_region
      %252 = vsyncadd [#allocation3], 0
      %s254 = sshll.u32 [#allocation2], 4
      %s255 = int_to_ptr.vmem [resolvable:$true] %s254
      %s256 = sshll.u32 %s11, 4
      %s257 = int_to_ptr.hbm [resolvable:$true] %s256
      %259 = dma.vmem_to_hbm [thread:$0]  %s255, 128, %s257, [#allocation3]
    $region49: #{tpu_custom_call.1} parent=1 // pred_fallthru
      _
    // Predicated region
    $region50: #{tpu_custom_call.1} parent=1 // pred_check
      _
    $region51: #{tpu_custom_call.1} parent=1 // pred_check_branch
      %261 = sbr.rel (0) target = $region53
    $region52: #{tpu_custom_call.1} parent=1 // pred_region
      %263 = dma.done [#allocation3], 128
    $region53: #{tpu_custom_call.1} parent=1 // pred_fallthru
      _
    %264 = vsyncpa [#allocation3], 1

</llo_original>
